<compile_context>
chip_gen: v5e
topology: v5e:2x2
jax: 0.10.0
libtpu: 0.0.40
codegen_flags: <defaults>
</compile_context>

<pallas_src>
from typing import NamedTuple

import jax
import jax.numpy as jnp
from jax.experimental import pallas as pl
from jax.experimental.pallas import tpu as pltpu


SOFTPLUS_BETA = 500.0
SOFTPLUS_INV_BETA = 1.0 / SOFTPLUS_BETA
SOFTPLUS_THRESHOLD = 20.0  # PyTorch default: identity when beta*x > 20


def _round_up(n, k):
    return ((n + k - 1) // k) * k


# ---------------------------------------------------------------------------
# Kernel
# ---------------------------------------------------------------------------
def drift_kernel(x_ref, w1_ref, b1_ref, w2_ref, b2_ref, o_ref):
    # x_ref : (Din, bt)    batch on lanes
    # w1_ref: (H_p, Din)   b1_ref: (H_p, 1)
    # w2_ref: (M,   H_p)   b2_ref: (M,   1)
    # o_ref : (M,   bt)
    x = x_ref[...]

    # fc: (H_p, Din) @ (Din, bt) + (H_p, 1)  -> lane-broadcast bias add
    h = jnp.dot(w1_ref[...], x, preferred_element_type=jnp.float32) + b1_ref[...]

    # Softplus(beta=500) with PyTorch's numerical-stability threshold.
    # exp/log1p ride the EUP slot; the clamp keeps the unselected branch finite.
    bh = SOFTPLUS_BETA * h
    sp = jnp.where(
        bh > SOFTPLUS_THRESHOLD,
        h,
        jnp.log1p(jnp.exp(jnp.minimum(bh, SOFTPLUS_THRESHOLD))) * SOFTPLUS_INV_BETA,
    )

    # fc2: (M, H_p) @ (H_p, bt) + (M, 1)
    out = jnp.dot(w2_ref[...], sp, preferred_element_type=jnp.float32) + b2_ref[...]
    o_ref[...] = out.astype(o_ref.dtype)


# ---------------------------------------------------------------------------
# Parameter preparation (pad hidden dim once, host/XLA side)
# ---------------------------------------------------------------------------
class DriftParams(NamedTuple):
    w1_t: jax.Array  # (H_p, Din)
    b1_t: jax.Array  # (H_p, 1)
    w2_t: jax.Array  # (M, H_p)
    b2_t: jax.Array  # (M, 1)
    d_in: int        # true Din
    m_out: int       # true M


def prepare_drift_params(w1, b1, w2, b2) -> DriftParams:
    """w1: (H, Din), b1: (H,), w2: (M, H), b2: (M,)  -- nn.Linear layout."""
    H, Din = w1.shape
    M = w2.shape[0]
    H_p = _round_up(H, 8)  # hidden dim never hits HBM activations; pad once.
    dt = w1.dtype

    w1_t = jnp.zeros((H_p, Din), dt).at[:H, :].set(w1)
    b1_t = jnp.zeros((H_p, 1), dt).at[:H, 0].set(b1)
    # Zero-padded H columns of w2_t cancel the softplus(0)=log(2)/beta output of
    # the padded hidden rows, so the padding is mathematically exact.
    w2_t = jnp.zeros((M, H_p), dt).at[:, :H].set(w2)
    b2_t = b2.reshape(M, 1).astype(dt)
    return DriftParams(w1_t, b1_t, w2_t, b2_t, Din, M)


# ---------------------------------------------------------------------------
# Forward wrappers
# ---------------------------------------------------------------------------
def _choose_batch_tile(b_padded: int, batch_tile: int) -> int:
    """Lane-dense tile: as large as allowed, but keep >= 2 grid steps (v7x TCs)."""
    bt = max(128, min(_round_up(batch_tile, 128), b_padded))
    if b_padded >= 256:
        bt = min(bt, _round_up(pl.cdiv(b_padded, 2), 128))
    return bt


def drift_forward_t(x_t, params: DriftParams, *, batch_tile: int = 8192):
    """Feature-major fast path: x_t (Din, B) -> (M, B).  No wrapper transpose."""
    Din, B = x_t.shape
    assert Din == params.d_in, (Din, params.d_in)
    H_p = params.w1_t.shape[0]
    M = params.m_out

    # Only pad the batch when it is not already lane-aligned (cheap / skipped
    # for the typical large, 128-aligned path counts of the SDE solver).
    B_p = _round_up(B, 128)
    if B_p != B:
        x_t = jnp.pad(x_t, ((0, 0), (0, B_p - B)))

    bt = _choose_batch_tile(B_p, batch_tile)
    grid = (pl.cdiv(B_p, bt),)  # partial last block -> masked boundary stores

    out_p = pl.pallas_call(
        drift_kernel,
        out_shape=jax.ShapeDtypeStruct((M, B_p), x_t.dtype),
        grid_spec=pltpu.PrefetchScalarGridSpec(
            num_scalar_prefetch=0,
            grid=grid,
            in_specs=[
                pl.BlockSpec((Din, bt), lambda i: (0, i)),    # x tile (lane-dense)
                pl.BlockSpec((H_p, Din), lambda i: (0, 0)),   # W1 (resident)
                pl.BlockSpec((H_p, 1), lambda i: (0, 0)),     # b1 (resident)
                pl.BlockSpec((M, H_p), lambda i: (0, 0)),     # W2 (resident)
                pl.BlockSpec((M, 1), lambda i: (0, 0)),       # b2 (resident)
            ],
            out_specs=pl.BlockSpec((M, bt), lambda i: (0, i)),
        ),
        compiler_params=pltpu.CompilerParams(
            dimension_semantics=("parallel",),  # megacore sharding on v7x
        ),
    )(x_t, params.w1_t, params.b1_t, params.w2_t, params.b2_t)

    return out_p if B_p == B else out_p[:, :B]


def drift_forward(x, params: DriftParams, *, batch_tile: int = 8192):
    """PyTorch-layout compatibility wrapper: x (B, Din) -> (B, M)."""
    return drift_forward_t(x.T, params, batch_tile=batch_tile).T


# ---------------------------------------------------------------------------
# Init + pure-JAX reference (PyTorch semantics, nn.Linear layout)
# ---------------------------------------------------------------------------
def init_drift_params(key, p, m, dtype=jnp.float32):
    """Uniform +-1/sqrt(fan_in), same layout as nn.Linear: W is (out, in)."""
    d_in = m * (p + 1) + 1
    d_hidden = 2 * d_in
    k1, k2, k3, k4 = jax.random.split(key, 4)

    lim1 = 1.0 / jnp.sqrt(jnp.float32(d_in))
    lim2 = 1.0 / jnp.sqrt(jnp.float32(d_hidden))

    w1 = jax.random.uniform(k1, (d_hidden, d_in), dtype, -lim1, lim1)
    b1 = jax.random.uniform(k2, (d_hidden,), dtype, -lim1, lim1)
    w2 = jax.random.uniform(k3, (m, d_hidden), dtype, -lim2, lim2)
    b2 = jax.random.uniform(k4, (m,), dtype, -lim2, lim2)
    return w1, b1, w2, b2


def drift_reference(x, w1, b1, w2, b2):
    h = x @ w1.T + b1
    bh = SOFTPLUS_BETA * h
    sp = jnp.where(
        bh > SOFTPLUS_THRESHOLD,
        h,
        jnp.log1p(jnp.exp(jnp.minimum(bh, SOFTPLUS_THRESHOLD))) * SOFTPLUS_INV_BETA,
    )
    return sp @ w2.T + b2


if __name__ == "__main__":
    # Small shapes consistent with the module: p=2 lags, m=4 state dim.
    p_lags, m = 2, 4
    d_in = m * (p_lags + 1) + 1          # 13
    batch = 16

    key = jax.random.PRNGKey(0)
    kx, kp = jax.random.split(key)

    x = jax.random.normal(kx, (batch, d_in), jnp.float32)
    w1, b1, w2, b2 = init_drift_params(kp, p_lags, m)
    params = prepare_drift_params(w1, b1, w2, b2)

    # PyTorch-layout path.
    out = jax.block_until_ready(drift_forward(x, params))
    ref = drift_reference(x, w1, b1, w2, b2)
    assert out.shape == (batch, m), out.shape
    assert jnp.allclose(out, ref, atol=1e-5, rtol=1e-5), float(
        jnp.max(jnp.abs(out - ref))
    )

    # Feature-major fast path, ragged batch: exercises 128-pad + 2-step grid.
    xb = jax.random.normal(jax.random.PRNGKey(1), (d_in, 1000), jnp.float32)
    outb = jax.block_until_ready(drift_forward_t(xb, params))
    refb = drift_reference(xb.T, w1, b1, w2, b2).T
    assert outb.shape == (m, 1000), outb.shape
    assert jnp.allclose(outb, refb, atol=1e-5, rtol=1e-5), float(
        jnp.max(jnp.abs(outb - refb))
    )

    # Ragged batch whose 128-padded size is not a multiple of the chosen tile:
    # exercises the masked partial last grid block.
    xc = jax.random.normal(jax.random.PRNGKey(2), (d_in, 777), jnp.float32)
    outc = jax.block_until_ready(drift_forward_t(xc, params))
    refc = drift_reference(xc.T, w1, b1, w2, b2).T
    assert outc.shape == (m, 777), outc.shape
    assert jnp.allclose(outc, refc, atol=1e-5, rtol=1e-5), float(
        jnp.max(jnp.abs(outc - refc))
    )

    print("KERNEL_OK")
</pallas_src>

<mosaic_0001>
module attributes {stable_mosaic.version = 11 : i64} {
  func.func @drift_kernel(%arg0: i32, %arg1: memref<13x128xf32, #tpu.memory_space<vmem>>, %arg2: memref<32x13xf32, #tpu.memory_space<vmem>>, %arg3: memref<32x1xf32, #tpu.memory_space<vmem>>, %arg4: memref<4x32xf32, #tpu.memory_space<vmem>>, %arg5: memref<4x1xf32, #tpu.memory_space<vmem>>, %arg6: memref<4x128xf32, #tpu.memory_space<vmem>>) attributes {dimension_semantics = [#tpu.dimension_semantics<parallel>], iteration_bounds = array<i64: 1>, scalar_prefetch = 0 : i64, scratch_operands = 0 : i64, tpu.core_type = #tpu.core_type<tc>, window_params = [{transform_indices = @transform_0, window_bounds = array<i64: 13, 128>}, {pipeline_mode = #tpu.pipeline_mode<synchronous>, transform_indices = @transform_1, window_bounds = array<i64: 32, 13>}, {pipeline_mode = #tpu.pipeline_mode<synchronous>, transform_indices = @transform_2, window_bounds = array<i64: 32, 1>}, {pipeline_mode = #tpu.pipeline_mode<synchronous>, transform_indices = @transform_3, window_bounds = array<i64: 4, 32>}, {pipeline_mode = #tpu.pipeline_mode<synchronous>, transform_indices = @transform_4, window_bounds = array<i64: 4, 1>}, {transform_indices = @transform_5, window_bounds = array<i64: 4, 128>}]} {
    %c0 = arith.constant 0 : index
    %c0_0 = arith.constant 0 : index
    %0 = vector.load %arg1[%c0, %c0_0] : memref<13x128xf32, #tpu.memory_space<vmem>>, vector<13x128xf32>
    %c0_1 = arith.constant 0 : index
    %c0_2 = arith.constant 0 : index
    %1 = vector.load %arg2[%c0_1, %c0_2] : memref<32x13xf32, #tpu.memory_space<vmem>>, vector<32x13xf32>
    %cst = arith.constant dense<0.000000e+00> : vector<32x128xf32>
    %2 = tpu.matmul %1, %0, %cst {dimension_numbers = #tpu.dot_dimension_numbers<[1], [0], [0], [1], [0, 0, 1, 1], [], []>} : vector<32x13xf32>, vector<13x128xf32>, vector<32x128xf32> -> vector<32x128xf32>
    %c0_3 = arith.constant 0 : index
    %c0_4 = arith.constant 0 : index
    %3 = vector.load %arg3[%c0_3, %c0_4] : memref<32x1xf32, #tpu.memory_space<vmem>>, vector<32x1xf32>
    %4 = vector.broadcast %3 : vector<32x1xf32> to vector<32x128xf32>
    %5 = arith.addf %2, %4 : vector<32x128xf32>
    %cst_5 = arith.constant 5.000000e+02 : f32
    %6 = vector.broadcast %cst_5 : f32 to vector<32x128xf32>
    %7 = arith.mulf %6, %5 : vector<32x128xf32>
    %cst_6 = arith.constant 2.000000e+01 : f32
    %8 = vector.broadcast %cst_6 : f32 to vector<32x128xf32>
    %9 = arith.cmpf ogt, %7, %8 : vector<32x128xf32>
    %cst_7 = arith.constant 2.000000e+01 : f32
    %10 = vector.broadcast %cst_7 : f32 to vector<32x128xf32>
    %11 = arith.minimumf %7, %10 : vector<32x128xf32>
    %12 = math.exp %11 : vector<32x128xf32>
    %13 = math.log1p %12 : vector<32x128xf32>
    %cst_8 = arith.constant 2.000000e-03 : f32
    %14 = vector.broadcast %cst_8 : f32 to vector<32x128xf32>
    %15 = arith.mulf %13, %14 : vector<32x128xf32>
    %16 = arith.select %9, %5, %15 : vector<32x128xi1>, vector<32x128xf32>
    %c0_9 = arith.constant 0 : index
    %c0_10 = arith.constant 0 : index
    %17 = vector.load %arg4[%c0_9, %c0_10] : memref<4x32xf32, #tpu.memory_space<vmem>>, vector<4x32xf32>
    %cst_11 = arith.constant dense<0.000000e+00> : vector<4x128xf32>
    %18 = tpu.matmul %17, %16, %cst_11 {dimension_numbers = #tpu.dot_dimension_numbers<[1], [0], [0], [1], [0, 0, 1, 1], [], []>} : vector<4x32xf32>, vector<32x128xf32>, vector<4x128xf32> -> vector<4x128xf32>
    %c0_12 = arith.constant 0 : index
    %c0_13 = arith.constant 0 : index
    %19 = vector.load %arg5[%c0_12, %c0_13] : memref<4x1xf32, #tpu.memory_space<vmem>>, vector<4x1xf32>
    %20 = vector.broadcast %19 : vector<4x1xf32> to vector<4x128xf32>
    %21 = arith.addf %18, %20 : vector<4x128xf32>
    %c0_14 = arith.constant 0 : index
    %c0_15 = arith.constant 0 : index
    %22 = vector.load %arg6[%c0_14, %c0_15] : memref<4x128xf32, #tpu.memory_space<vmem>>, vector<4x128xf32>
    tpu.vector_store %arg6[%c0_14, %c0_15], %21 {strides = array<i32>} : memref<4x128xf32, #tpu.memory_space<vmem>>, vector<4x128xf32>,
    return
  }
  func.func @transform_0(%arg0: i32) -> (i32, i32) {
    %c0_i32 = arith.constant 0 : i32
    %c0_i32_0 = arith.constant 0 : i32
    return %c0_i32, %arg0 : i32, i32
  }
  func.func @transform_1(%arg0: i32) -> (i32, i32) {
    %c0_i32 = arith.constant 0 : i32
    %c0_i32_0 = arith.constant 0 : i32
    %c0_i32_1 = arith.constant 0 : i32
    return %c0_i32, %c0_i32_0 : i32, i32
  }
  func.func @transform_2(%arg0: i32) -> (i32, i32) {
    %c0_i32 = arith.constant 0 : i32
    %c0_i32_0 = arith.constant 0 : i32
    %c0_i32_1 = arith.constant 0 : i32
    return %c0_i32, %c0_i32_0 : i32, i32
  }
  func.func @transform_3(%arg0: i32) -> (i32, i32) {
    %c0_i32 = arith.constant 0 : i32
    %c0_i32_0 = arith.constant 0 : i32
    %c0_i32_1 = arith.constant 0 : i32
    return %c0_i32, %c0_i32_0 : i32, i32
  }
  func.func @transform_4(%arg0: i32) -> (i32, i32) {
    %c0_i32 = arith.constant 0 : i32
    %c0_i32_0 = arith.constant 0 : i32
    %c0_i32_1 = arith.constant 0 : i32
    return %c0_i32, %c0_i32_0 : i32, i32
  }
  func.func @transform_5(%arg0: i32) -> (i32, i32) {
    %c0_i32 = arith.constant 0 : i32
    %c0_i32_0 = arith.constant 0 : i32
    return %c0_i32, %arg0 : i32, i32
  }
}

</mosaic_0001>

<llo_original>
// kernel: tpu_custom_call.1
$region0: #{tpu_custom_call.1}
  #allocation0 [shape = 'u32[]', space=smem, size = 0x4, offset = 0x4, fixed_abs, tag = 'smem constant byte address 0x4 - core index']
  #allocation1 [shape = 'u32[72,128]{1,0:T(1,128)}', space=vmem, size = 0x9000, scoped, tag = 'internal scratch']
  %s0 = inlined_call_operand.vmem [shape: f32[13,128], index: 0, kind: input, shape index: {}]
  %s1 = inlined_call_operand.vmem [shape: f32[32,13], index: 1, kind: input, shape index: {}]
  %s2 = inlined_call_operand.vmem [shape: f32[32,1], index: 2, kind: input, shape index: {}]
  %s3 = inlined_call_operand.vmem [shape: f32[4,32], index: 3, kind: input, shape index: {}]
  %s4 = inlined_call_operand.vmem [shape: f32[4,1], index: 4, kind: input, shape index: {}]
  %s5 = inlined_call_operand.hbm [shape: f32[4,128], index: 5, kind: output, shape index: {}]
  %s6 = sld [smem:[#allocation0]]
  $region30: #{tpu_custom_call.1} parent=0
    _
  %s8 = ssub.s32 1, %s6
  %s9 = scalar_select 0, %s8, %s6
  $region1: #{tpu_custom_call.1} parent=0
    #allocation2 [shape = 'u8[2048]{0}', space=vmem, size = 0x800, scoped, tag = 'output window, operand 0, single buffered']
    #allocation3 [shape = 's32[1]{0}', space=sflag, size = 0x4, scoped, tag = 'scoped memory for tpu_custom_call.1']
    %10 = vsyncpa [#allocation3], 0
    // Predicated region
    $region2: #{tpu_custom_call.1} parent=1 // pred_check
      _
    $region3: #{tpu_custom_call.1} parent=1 // pred_check_branch
      %12 = sbr.rel (0) target = $region5
    $region4: #{tpu_custom_call.1} parent=1 // pred_region
      _
    $region5: #{tpu_custom_call.1} parent=1 // pred_fallthru
      _
    // Predicated region
    $region6: #{tpu_custom_call.1} parent=1 // pred_check
      _
    $region7: #{tpu_custom_call.1} parent=1 // pred_check_branch
      %14 = sbr.rel (0) target = $region9
    $region8: #{tpu_custom_call.1} parent=1 // pred_region
      _
    $region9: #{tpu_custom_call.1} parent=1 // pred_fallthru
      _
    // Predicated region
    $region10: #{tpu_custom_call.1} parent=1 // pred_check
      _
    $region11: #{tpu_custom_call.1} parent=1 // pred_check_branch
      %16 = sbr.rel (0) target = $region13
    $region12: #{tpu_custom_call.1} parent=1 // pred_region
      _
    $region13: #{tpu_custom_call.1} parent=1 // pred_fallthru
      _
    // Predicated region
    $region14: #{tpu_custom_call.1} parent=1 // pred_check
      _
    $region15: #{tpu_custom_call.1} parent=1 // pred_check_branch
      %18 = sbr.rel (0) target = $region17
    $region16: #{tpu_custom_call.1} parent=1 // pred_region
      _
    $region17: #{tpu_custom_call.1} parent=1 // pred_fallthru
      _
    // Predicated region
    $region18: #{tpu_custom_call.1} parent=1 // pred_check
      _
    $region19: #{tpu_custom_call.1} parent=1 // pred_check_branch
      %20 = sbr.rel (0) target = $region21
    $region20: #{tpu_custom_call.1} parent=1 // pred_region
      _
    $region21: #{tpu_custom_call.1} parent=1 // pred_fallthru
      _
    %v21 = vld [vmem:[%s0] sm:$0xff]
    %v22 = vld [vmem:[%s0 + $0x8] sm:$0x1f]
    %v23 = vld [vmem:[%s1] sm:$0xff]
    %v24 = vld [vmem:[%s1 + $0x8] sm:$0xff]
    %v25 = vld [vmem:[%s1 + $0x10] sm:$0xff]
    %v26 = vld [vmem:[%s1 + $0x18] sm:$0xff]
    %v27 = vld [vmem:[%s2] sm:$0xff]
    %v28 = vld [vmem:[%s2 + $0x8] sm:$0xff]
    %v29 = vld [vmem:[%s2 + $0x10] sm:$0xff]
    %v30 = vld [vmem:[%s2 + $0x18] sm:$0xff]
    %32 = vset.pattern.permute.xlu0 0
    %33 = vperm.xlu0 %32, %v27
    %v34 = vpop.permute.xlu0 %33
    %37 = vset.pattern.permute.xlu0 0
    %38 = vperm.xlu0 %37, %v28
    %v39 = vpop.permute.xlu0 %38
    %42 = vset.pattern.permute.xlu0 0
    %43 = vperm.xlu0 %42, %v29
    %v44 = vpop.permute.xlu0 %43
    %47 = vset.pattern.permute.xlu0 0
    %48 = vperm.xlu0 %47, %v30
    %v49 = vpop.permute.xlu0 %48
    %vm51 = vcmask 105472
    %v53 = vsel %vm51, %v23, 0
    %v56 = vsel %vm51, %v24, 0
    %v59 = vsel %vm51, %v25, 0
    %v62 = vsel %vm51, %v26, 0
    %vm64 = vcmask 1044480
    %v66 = vsel %vm64, %v22, 0
    %68 = vmatpush.msra.mxu0 0.0
    %69 = vmatpush.msra.mxu0 0.0
    %70 = vmatpush.msra.mxu0 0.0
    %71 = vmatpush.msra.mxu0 0.0
    %72 = vmatpush.msra.mxu0 0.0
    %73 = vmatpush.msra.mxu0 0.0
    %74 = vmatpush.msra.mxu0 0.0
    %75 = vmatpush.msra.mxu0 0.0
    %76 = vmatpush.msra.mxu0 0.0
    %77 = vmatpush.msra.mxu0 0.0
    %78 = vmatpush.msra.mxu0 0.0
    %79 = vmatpush.msra.mxu0 0.0
    %80 = vmatpush.msra.mxu0 0.0
    %81 = vmatpush.msra.mxu0 0.0
    %82 = vmatpush.msra.mxu0 %v66
    %83 = vmatpush.msra.mxu0 %v21
    %84 = vmatmul.f32.gmra.mxu0 %v53
    %v85 = vpop.f32.mrf.mxu0
    %v86 = vadd.f32 %v34, %v85
    %87 = vmatmul.f32.gmra.mxu0 %v56
    %v88 = vpop.f32.mrf.mxu0
    %v89 = vadd.f32 %v39, %v88
    %90 = vmatmul.f32.gmra.mxu0 %v59
    %v91 = vpop.f32.mrf.mxu0
    %v92 = vadd.f32 %v44, %v91
    %93 = vmatmul.f32.gmra.mxu0 %v62
    %v94 = vpop.f32.mrf.mxu0
    %v95 = vadd.f32 %v49, %v94
    %96 = vdwg.mxu0
    %v97 = vmul.f32 %v86, 500.0
    %v98 = vmul.f32 %v89, 500.0
    %v99 = vmul.f32 %v92, 500.0
    %v100 = vmul.f32 %v95, 500.0
    %vm101 = vcmp.gt.f32.partialorder %v97, 20.0
    %vm102 = vcmp.gt.f32.partialorder %v98, 20.0
    %vm103 = vcmp.gt.f32.partialorder %v99, 20.0
    %vm104 = vcmp.gt.f32.partialorder %v100, 20.0
    %v105 = vmin.f32 %v97, 20.0
    %v106 = vmin.f32 %v98, 20.0
    %v107 = vmin.f32 %v99, 20.0
    %v108 = vmin.f32 %v100, 20.0
    %v109 = vmul.f32 %v105, 1.442695
    %v110 = vpow.pop %v109
    %v111 = vmul.f32 %v106, 1.442695
    %v112 = vpow.pop %v111
    %v113 = vmul.f32 %v107, 1.442695
    %v114 = vpow.pop %v113
    %v115 = vmul.f32 %v108, 1.442695
    %v116 = vpow.pop %v115
    %v117 = vadd.f32 %v110, 1.0
    %v118 = vlog2.pop %v117
    %v119 = vmul.f32 %v118, 0.6931472
    %v120 = vmul.f32 -0.5, %v110
    %v121 = vadd.f32 %v120, 1.0
    %v122 = vmul.f32 %v121, %v110
    %v123 = vand.u32 2147483647, %v110
    %vm124 = vcmp.lt.f32.partialorder %v123, 0.0004427343
    %v125 = vsel %vm124, %v122, %v119
    %v126 = vadd.f32 %v112, 1.0
    %v127 = vlog2.pop %v126
    %v128 = vmul.f32 %v127, 0.6931472
    %v129 = vmul.f32 -0.5, %v112
    %v130 = vadd.f32 %v129, 1.0
    %v131 = vmul.f32 %v130, %v112
    %v132 = vand.u32 2147483647, %v112
    %vm133 = vcmp.lt.f32.partialorder %v132, 0.0004427343
    %v134 = vsel %vm133, %v131, %v128
    %v135 = vadd.f32 %v114, 1.0
    %v136 = vlog2.pop %v135
    %v137 = vmul.f32 %v136, 0.6931472
    %v138 = vmul.f32 -0.5, %v114
    %v139 = vadd.f32 %v138, 1.0
    %v140 = vmul.f32 %v139, %v114
    %v141 = vand.u32 2147483647, %v114
    %vm142 = vcmp.lt.f32.partialorder %v141, 0.0004427343
    %v143 = vsel %vm142, %v140, %v137
    %v144 = vadd.f32 %v116, 1.0
    %v145 = vlog2.pop %v144
    %v146 = vmul.f32 %v145, 0.6931472
    %v147 = vmul.f32 -0.5, %v116
    %v148 = vadd.f32 %v147, 1.0
    %v149 = vmul.f32 %v148, %v116
    %v150 = vand.u32 2147483647, %v116
    %vm151 = vcmp.lt.f32.partialorder %v150, 0.0004427343
    %v152 = vsel %vm151, %v149, %v146
    %v153 = vmul.f32 %v125, 0.002
    %v154 = vmul.f32 %v134, 0.002
    %v155 = vmul.f32 %v143, 0.002
    %v156 = vmul.f32 %v152, 0.002
    %v157 = vsel %vm101, %v86, %v153
    %v158 = vsel %vm102, %v89, %v154
    %v159 = vsel %vm103, %v92, %v155
    %v160 = vsel %vm104, %v95, %v156
    %v161 = vld [vmem:[%s3] sm:$0xf]
    %v162 = vld [vmem:[%s4] sm:$0xf]
    %164 = vset.pattern.permute.xlu0 0
    %165 = vperm.xlu0 %164, %v162
    %v166 = vpop.permute.xlu0 %165
    %vm168 = vcmask 261120
    %v170 = vsel %vm168, %v161, 0
    %172 = vmatpush.msra.mxu0 0.0
    %173 = vmatpush.msra.mxu0 0.0
    %174 = vmatpush.msra.mxu0 0.0
    %175 = vmatpush.msra.mxu0 0.0
    %176 = vmatpush.msra.mxu0 0.0
    %177 = vmatpush.msra.mxu0 0.0
    %178 = vmatpush.msra.mxu0 0.0
    %179 = vmatpush.msra.mxu0 0.0
    %180 = vmatpush.msra.mxu0 0.0
    %181 = vmatpush.msra.mxu0 0.0
    %182 = vmatpush.msra.mxu0 0.0
    %183 = vmatpush.msra.mxu0 0.0
    %184 = vmatpush.msra.mxu0 %v160
    %185 = vmatpush.msra.mxu0 %v159
    %186 = vmatpush.msra.mxu0 %v158
    %187 = vmatpush.msra.mxu0 %v157
    %188 = vmatmul.f32.gmra.mxu0 %v170
    %v189 = vpop.f32.mrf.mxu0
    %v190 = vadd.f32 %v166, %v189
    %191 = vdwg.mxu0
    %192 = vst [vmem:[#allocation2] sm:$0xf] %v190
    // Predicated region
    $region22: #{tpu_custom_call.1} parent=1 // pred_check
      _
    $region23: #{tpu_custom_call.1} parent=1 // pred_check_branch
      %194 = sbr.rel (0) target = $region25
    $region24: #{tpu_custom_call.1} parent=1 // pred_region
      %196 = vsyncadd [#allocation3], 0
      %s198 = sshll.u32 [#allocation2], 4
      %s199 = int_to_ptr.vmem [resolvable:$true] %s198
      %s200 = sshll.u32 %s5, 4
      %s201 = int_to_ptr.hbm [resolvable:$true] %s200
      %203 = dma.vmem_to_hbm [thread:$0]  %s199, 64, %s201, [#allocation3]
    $region25: #{tpu_custom_call.1} parent=1 // pred_fallthru
      _
    // Predicated region
    $region26: #{tpu_custom_call.1} parent=1 // pred_check
      _
    $region27: #{tpu_custom_call.1} parent=1 // pred_check_branch
      %205 = sbr.rel (0) target = $region29
    $region28: #{tpu_custom_call.1} parent=1 // pred_region
      %207 = dma.done [#allocation3], 64
    $region29: #{tpu_custom_call.1} parent=1 // pred_fallthru
      _
    %208 = vsyncpa [#allocation3], 1

</llo_original>
